<compile_context>
chip_gen: v6e
topology: v6e:2x2x1
jax: 0.10.0
libtpu: 0.0.40
codegen_flags: <defaults>
</compile_context>

<pallas_src>
import functools

import jax
import jax.numpy as jnp
from jax.experimental import pallas as pl
from jax.experimental.pallas import tpu as pltpu

CLAMP_MAX = 0.9
CLAMP_MIN = -1.0


def _clamp(v):
    # torch.clamp_max(0.9) then torch.clamp_min(-1.0)  ==  min then max.
    return jnp.maximum(jnp.minimum(v, CLAMP_MAX), CLAMP_MIN)


def _conv1x1_clamp_pad_kernel(pad, w_ref, b_ref, x_ref, o_ref):
    """Fused zero-pad + 1x1 conv (Cin=1) + clamps.

    w_ref, b_ref: SMEM (Cout,) f32 scalars.
    x_ref: VMEM (1, 1, H, W) unpadded input image.
    o_ref: VMEM (1, Cout, Ho, Wo) padded NCHW output (Ho=H+2p, Wo=W+2p)."""
    x = x_ref[0, 0]                          # (H, W) -- pixels lane-dense
    h, w = x.shape
    cout = o_ref.shape[1]
    ho, wo = o_ref.shape[2], o_ref.shape[3]
    for c in range(cout):                    # Cout tiny & static -> unrolled
        wc = w_ref[c]
        bc = b_ref[c]
        # Border pixels convolve the zero padding -> they only see the bias.
        border = _clamp(jnp.full((ho, wo), bc, jnp.float32))
        o_ref[0, c] = border.astype(o_ref.dtype)
        # Interior: VPU broadcast FMA fused with both clamps, written at the
        # static (pad, pad) offset inside the padded plane.
        y = _clamp(x * wc + bc)
        o_ref[0, c, pl.ds(pad, h), pl.ds(pad, w)] = y.astype(o_ref.dtype)


def _conv1x1_clamp_tiled_kernel(w_ref, b_ref, x_ref, o_ref):
    """Row-tiled fallback for large images (input already zero-padded).

    x_ref: VMEM (1, TR, Wo) slab of padded pixels.
    o_ref: VMEM (1, Cout, TR, Wo) output block (NCHW order)."""
    x = x_ref[0]                             # (TR, Wo)
    cout = o_ref.shape[1]
    ys = [_clamp(x * w_ref[c] + b_ref[c]) for c in range(cout)]
    # One contiguous (Cout, TR, Wo) store stream (longer unmasked store run).
    o_ref[0] = jnp.stack(ys, axis=0).astype(o_ref.dtype)


def _default_vmem_budget_bytes():
    """VMEM budget for double-buffered blocks, per TPU generation."""
    try:
        vmem = pltpu.get_tpu_info().vmem_capacity_bytes
    except Exception:
        return 8 << 20                       # conservative, safe everywhere
    # 128 MiB parts (v5e/v6e): bigger tiles get closer to the HBM roofline.
    # 64 MiB parts (v7x): keep tiles modest; faster HBM hides step overhead.
    return (16 << 20) if vmem > (64 << 20) else (8 << 20)


def _pick_row_tile(ho, wo, cout, budget_bytes, n_batch):
    """Largest row tile (multiple of 8, or full Ho) for the tiled path."""
    per_row = 4 * wo * (1 + cout) * 2        # f32, in + Cout out planes, 2 bufs
    rows = max(int(budget_bytes // max(per_row, 1)), 1)
    if n_batch == 1:
        # >= 2 row steps so the "parallel" axis can shard across both v7x TCs
        # when there is no batch parallelism.
        rows = min(rows, (-(-ho // 2) + 7) // 8 * 8)
    if rows >= ho:
        return ho
    # Note: the >=8 floor can exceed the soft budget for extremely wide rows;
    # harmless (vmem_limit_bytes below gives headroom).
    return max(8, rows // 8 * 8)


def model_forward(x, weight, bias, *, padding=2, vmem_budget_bytes=None):
    """x: (N, 1, H, W); weight: (Cout, 1, 1, 1); bias: (Cout,).
    Returns (N, Cout, H + 2*padding, W + 2*padding) f32."""
    N, Cin, H, W = x.shape
    assert Cin == 1, "kernel specialized for Cin == 1 (as in the module)"
    Cout = weight.shape[0]
    Ho, Wo = H + 2 * padding, W + 2 * padding

    w = weight.reshape(Cout).astype(jnp.float32)   # (Cout,) since Cin == k == 1
    b = bias.reshape(Cout).astype(jnp.float32)     # (Cout,)
    budget = (_default_vmem_budget_bytes()
              if vmem_budget_bytes is None else vmem_budget_bytes)

    out_shape = jax.ShapeDtypeStruct((N, Cout, Ho, Wo), jnp.float32)

    # --- Fast path: whole padded image per batch element fits one block, so
    # the zero-pad is fused into the kernel (no wrapper pad, no extra launch).
    fused_block_bytes = 4 * (H * W + Cout * Ho * Wo) * 2   # in+out, 2 buffers
    if fused_block_bytes <= budget:
        cost = pl.CostEstimate(
            flops=4 * N * Cout * Ho * Wo,            # FMA + clamps (advisory)
            transcendentals=0,
            bytes_accessed=4 * N * (H * W + Cout * Ho * Wo) + 8 * Cout)
        return pl.pallas_call(
            functools.partial(_conv1x1_clamp_pad_kernel, padding),
            out_shape=out_shape,
            grid=(N,),
            in_specs=[
                pl.BlockSpec(memory_space=pltpu.MemorySpace.SMEM),   # weights
                pl.BlockSpec(memory_space=pltpu.MemorySpace.SMEM),   # biases
                pl.BlockSpec((1, 1, H, W), lambda n: (n, 0, 0, 0)),  # unpadded x
            ],
            out_specs=pl.BlockSpec((1, Cout, Ho, Wo), lambda n: (n, 0, 0, 0)),
            compiler_params=pltpu.CompilerParams(
                dimension_semantics=("parallel",),
                vmem_limit_bytes=32 << 20),
            cost_estimate=cost,
        )(w, b, x.astype(jnp.float32))

    # --- Fallback: row-tiled pipeline for large images.
    # TODO(synk): fuse the zero-pad into the tiled path too (needs per-tile
    # border handling in the index maps); one wrapper pad kept here.
    xp = jnp.pad(
        x.reshape(N, H, W).astype(jnp.float32),
        ((0, 0), (padding, padding), (padding, padding)))           # (N, Ho, Wo)
    tr = _pick_row_tile(Ho, Wo, Cout, budget, N)
    grid = (N, pl.cdiv(Ho, tr))
    cost = pl.CostEstimate(
        flops=4 * N * Cout * Ho * Wo,
        transcendentals=0,
        bytes_accessed=4 * N * Ho * Wo * (1 + Cout) + 8 * Cout)
    return pl.pallas_call(
        _conv1x1_clamp_tiled_kernel,
        out_shape=out_shape,
        grid=grid,
        in_specs=[
            pl.BlockSpec(memory_space=pltpu.MemorySpace.SMEM),       # weights
            pl.BlockSpec(memory_space=pltpu.MemorySpace.SMEM),       # biases
            pl.BlockSpec((1, tr, Wo), lambda n, r: (n, r, 0)),       # padded x
        ],
        out_specs=pl.BlockSpec((1, Cout, tr, Wo), lambda n, r: (n, 0, r, 0)),
        compiler_params=pltpu.CompilerParams(
            dimension_semantics=("parallel", "parallel"),
            vmem_limit_bytes=32 << 20),
        cost_estimate=cost,
    )(w, b, xp)


if __name__ == "__main__":
    key = jax.random.PRNGKey(0)
    k_x, k_w, k_b = jax.random.split(key, 3)

    # Shapes implied by the module: Cin=1, Cout=2, k=1, padding=2; input 1x1x64x64.
    N, Cin, H, W = 1, 1, 64, 64
    Cout, PAD = 2, 2

    x = jax.random.normal(k_x, (N, Cin, H, W), dtype=jnp.float32)
    weight = jax.random.normal(k_w, (Cout, Cin, 1, 1), dtype=jnp.float32) * 0.5
    bias = jax.random.normal(k_b, (Cout,), dtype=jnp.float32) * 0.1

    # Plain-JAX reference: pad, per-channel scale+bias (1x1 conv, Cin=1), clamp.
    xp_ref = jnp.pad(x, ((0, 0), (0, 0), (PAD, PAD), (PAD, PAD)))
    ref = xp_ref * weight.reshape(1, Cout, 1, 1) + bias.reshape(1, Cout, 1, 1)
    ref = jnp.maximum(jnp.minimum(ref, CLAMP_MAX), CLAMP_MIN)

    # Fast (fused-pad, single-block) path -- the one the spec shape always takes.
    out = jax.block_until_ready(model_forward(x, weight, bias, padding=PAD))
    assert out.shape == (N, Cout, H + 2 * PAD, W + 2 * PAD), out.shape
    assert jnp.allclose(out, ref, atol=1e-5, rtol=1e-5), "fused-pad path mismatch"

    # Also exercise the row-tiled fallback path (used for very large images) by
    # forcing a tiny VMEM budget.
    out_tiled = jax.block_until_ready(
        model_forward(x, weight, bias, padding=PAD, vmem_budget_bytes=32 << 10))
    assert jnp.allclose(out_tiled, ref, atol=1e-5, rtol=1e-5), "tiled path mismatch"

    print("KERNEL_OK")
</pallas_src>

<mosaic_0001>
module attributes {stable_mosaic.version = 11 : i64} {
  func.func @_conv1x1_clamp_pad_kernel(%arg0: i32, %arg1: memref<2xf32, #tpu.memory_space<smem>>, %arg2: memref<2xf32, #tpu.memory_space<smem>>, %arg3: memref<1x1x64x64xf32, #tpu.memory_space<vmem>>, %arg4: memref<1x2x68x68xf32, #tpu.memory_space<vmem>>) attributes {dimension_semantics = [#tpu.dimension_semantics<parallel>], iteration_bounds = array<i64: 1>, scalar_prefetch = 0 : i64, scratch_operands = 0 : i64, tpu.core_type = #tpu.core_type<tc>, window_params = [{transform_indices = @transform_0, window_bounds = array<i64: 2>}, {transform_indices = @transform_1, window_bounds = array<i64: 2>}, {transform_indices = @transform_2, window_bounds = array<i64: 1, 1, 64, 64>}, {transform_indices = @transform_3, window_bounds = array<i64: 1, 2, 68, 68>}]} {
    %c0 = arith.constant 0 : index
    %c0_0 = arith.constant 0 : index
    %c0_1 = arith.constant 0 : index
    %c0_2 = arith.constant 0 : index
    %0 = vector.load %arg3[%c0, %c0_0, %c0_1, %c0_2] : memref<1x1x64x64xf32, #tpu.memory_space<vmem>>, vector<1x1x64x64xf32>
    %1 = vector.shape_cast %0 : vector<1x1x64x64xf32> to vector<64x64xf32>
    %c0_3 = arith.constant 0 : index
    %2 = memref.load %arg1[%c0_3] : memref<2xf32, #tpu.memory_space<smem>>
    %c0_4 = arith.constant 0 : index
    %3 = memref.load %arg2[%c0_4] : memref<2xf32, #tpu.memory_space<smem>>
    %4 = vector.broadcast %3 : f32 to vector<68x68xf32>
    %cst = arith.constant 0.899999976 : f32
    %5 = vector.broadcast %cst : f32 to vector<68x68xf32>
    %6 = arith.minimumf %4, %5 : vector<68x68xf32>
    %cst_5 = arith.constant -1.000000e+00 : f32
    %7 = vector.broadcast %cst_5 : f32 to vector<68x68xf32>
    %8 = arith.maximumf %6, %7 : vector<68x68xf32>
    %c0_6 = arith.constant 0 : index
    %c0_7 = arith.constant 0 : index
    %c0_8 = arith.constant 0 : index
    %c0_9 = arith.constant 0 : index
    %9 = vector.load %arg4[%c0_6, %c0_7, %c0_8, %c0_9] : memref<1x2x68x68xf32, #tpu.memory_space<vmem>>, vector<1x1x68x68xf32>
    %10 = vector.shape_cast %9 : vector<1x1x68x68xf32> to vector<68x68xf32>
    %11 = vector.shape_cast %8 : vector<68x68xf32> to vector<1x1x68x68xf32>
    tpu.vector_store %arg4[%c0_6, %c0_7, %c0_8, %c0_9], %11 {strides = array<i32>} : memref<1x2x68x68xf32, #tpu.memory_space<vmem>>, vector<1x1x68x68xf32>,
    %12 = vector.broadcast %2 : f32 to vector<64x64xf32>
    %13 = arith.mulf %1, %12 : vector<64x64xf32>
    %14 = vector.broadcast %3 : f32 to vector<64x64xf32>
    %15 = arith.addf %13, %14 : vector<64x64xf32>
    %cst_10 = arith.constant 0.899999976 : f32
    %16 = vector.broadcast %cst_10 : f32 to vector<64x64xf32>
    %17 = arith.minimumf %15, %16 : vector<64x64xf32>
    %cst_11 = arith.constant -1.000000e+00 : f32
    %18 = vector.broadcast %cst_11 : f32 to vector<64x64xf32>
    %19 = arith.maximumf %17, %18 : vector<64x64xf32>
    %c0_12 = arith.constant 0 : index
    %c0_13 = arith.constant 0 : index
    %c2 = arith.constant 2 : index
    %c2_14 = arith.constant 2 : index
    %20 = vector.load %arg4[%c0_12, %c0_13, %c2, %c2_14] : memref<1x2x68x68xf32, #tpu.memory_space<vmem>>, vector<1x1x64x64xf32>
    %21 = vector.shape_cast %20 : vector<1x1x64x64xf32> to vector<64x64xf32>
    %22 = vector.shape_cast %19 : vector<64x64xf32> to vector<1x1x64x64xf32>
    tpu.vector_store %arg4[%c0_12, %c0_13, %c2, %c2_14], %22 {strides = array<i32>} : memref<1x2x68x68xf32, #tpu.memory_space<vmem>>, vector<1x1x64x64xf32>,
    %c1 = arith.constant 1 : index
    %23 = memref.load %arg1[%c1] : memref<2xf32, #tpu.memory_space<smem>>
    %c1_15 = arith.constant 1 : index
    %24 = memref.load %arg2[%c1_15] : memref<2xf32, #tpu.memory_space<smem>>
    %25 = vector.broadcast %24 : f32 to vector<68x68xf32>
    %cst_16 = arith.constant 0.899999976 : f32
    %26 = vector.broadcast %cst_16 : f32 to vector<68x68xf32>
    %27 = arith.minimumf %25, %26 : vector<68x68xf32>
    %cst_17 = arith.constant -1.000000e+00 : f32
    %28 = vector.broadcast %cst_17 : f32 to vector<68x68xf32>
    %29 = arith.maximumf %27, %28 : vector<68x68xf32>
    %c0_18 = arith.constant 0 : index
    %c1_19 = arith.constant 1 : index
    %c0_20 = arith.constant 0 : index
    %c0_21 = arith.constant 0 : index
    %30 = vector.load %arg4[%c0_18, %c1_19, %c0_20, %c0_21] : memref<1x2x68x68xf32, #tpu.memory_space<vmem>>, vector<1x1x68x68xf32>
    %31 = vector.shape_cast %30 : vector<1x1x68x68xf32> to vector<68x68xf32>
    %32 = vector.shape_cast %29 : vector<68x68xf32> to vector<1x1x68x68xf32>
    tpu.vector_store %arg4[%c0_18, %c1_19, %c0_20, %c0_21], %32 {strides = array<i32>} : memref<1x2x68x68xf32, #tpu.memory_space<vmem>>, vector<1x1x68x68xf32>,
    %33 = vector.broadcast %23 : f32 to vector<64x64xf32>
    %34 = arith.mulf %1, %33 : vector<64x64xf32>
    %35 = vector.broadcast %24 : f32 to vector<64x64xf32>
    %36 = arith.addf %34, %35 : vector<64x64xf32>
    %cst_22 = arith.constant 0.899999976 : f32
    %37 = vector.broadcast %cst_22 : f32 to vector<64x64xf32>
    %38 = arith.minimumf %36, %37 : vector<64x64xf32>
    %cst_23 = arith.constant -1.000000e+00 : f32
    %39 = vector.broadcast %cst_23 : f32 to vector<64x64xf32>
    %40 = arith.maximumf %38, %39 : vector<64x64xf32>
    %c0_24 = arith.constant 0 : index
    %c1_25 = arith.constant 1 : index
    %c2_26 = arith.constant 2 : index
    %c2_27 = arith.constant 2 : index
    %41 = vector.load %arg4[%c0_24, %c1_25, %c2_26, %c2_27] : memref<1x2x68x68xf32, #tpu.memory_space<vmem>>, vector<1x1x64x64xf32>
    %42 = vector.shape_cast %41 : vector<1x1x64x64xf32> to vector<64x64xf32>
    %43 = vector.shape_cast %40 : vector<64x64xf32> to vector<1x1x64x64xf32>
    tpu.vector_store %arg4[%c0_24, %c1_25, %c2_26, %c2_27], %43 {strides = array<i32>} : memref<1x2x68x68xf32, #tpu.memory_space<vmem>>, vector<1x1x64x64xf32>,
    return
  }
  func.func @transform_0(%arg0: i32) -> i32 {
    %c0_i32 = arith.constant 0 : i32
    %c0_i32_0 = arith.constant 0 : i32
    return %c0_i32 : i32
  }
  func.func @transform_1(%arg0: i32) -> i32 {
    %c0_i32 = arith.constant 0 : i32
    %c0_i32_0 = arith.constant 0 : i32
    return %c0_i32 : i32
  }
  func.func @transform_2(%arg0: i32) -> (i32, i32, i32, i32) {
    %c0_i32 = arith.constant 0 : i32
    %c0_i32_0 = arith.constant 0 : i32
    %c0_i32_1 = arith.constant 0 : i32
    %c0_i32_2 = arith.constant 0 : i32
    return %arg0, %c0_i32, %c0_i32_0, %c0_i32_1 : i32, i32, i32, i32
  }
  func.func @transform_3(%arg0: i32) -> (i32, i32, i32, i32) {
    %c0_i32 = arith.constant 0 : i32
    %c0_i32_0 = arith.constant 0 : i32
    %c0_i32_1 = arith.constant 0 : i32
    %c0_i32_2 = arith.constant 0 : i32
    return %arg0, %c0_i32, %c0_i32_0, %c0_i32_1 : i32, i32, i32, i32
  }
}

</mosaic_0001>

<llo_original>
// kernel: tpu_custom_call.1
$region0: #{tpu_custom_call.1}
  #allocation0 [shape = 'u32[]', space=smem, size = 0x4, offset = 0x4, fixed_abs, tag = 'smem constant byte address 0x4 - core index']
  #allocation1 [shape = 'u32[144,128]{1,0:T(1,128)}', space=vmem, size = 0x12000, scoped, tag = 'internal scratch']
  %s0 = inlined_call_operand.hbm [shape: f32[2], index: 0, kind: input, shape index: {}]
  %s1 = inlined_call_operand.vmem [shape: f32[2], index: 1, kind: input, shape index: {}]
  %s2 = inlined_call_operand.hbm [shape: f32[1,1,64,64], index: 2, kind: input, shape index: {}]
  %s3 = inlined_call_operand.vmem [shape: f32[1,2,68,68], index: 3, kind: output, shape index: {}]
  %s4 = sld [smem:[#allocation0]]
  $region34: #{tpu_custom_call.1} parent=0
    _
  %s6 = ssub.s32 1, %s4
  %s7 = scalar_select 0, %s6, %s4
  $region1: #{tpu_custom_call.1} parent=0
    #allocation2 [shape = 'u8[512]{0}', space=smem, size = 0x200, scoped, tag = 'input window, operand 0, single buffered']
    #allocation3 [shape = 's32[1]{0}', space=sflag, size = 0x4, scoped, tag = 'scoped memory for tpu_custom_call.1']
    #allocation4 [shape = 's32[1]{0}', space=sflag, size = 0x4, scoped, tag = 'scoped memory for tpu_custom_call.1']
    #allocation5 [shape = 's32[1]{0}', space=sflag, size = 0x4, scoped, tag = 'scoped memory for tpu_custom_call.1']
    #allocation6 [shape = 'u8[512]{0}', space=smem, size = 0x200, scoped, tag = 'input window, operand 1, single buffered']
    #allocation7 [shape = 'u8[32768]{0}', space=vmem, size = 0x8000, scoped, tag = 'input window, operand 2, single buffered']
    %8 = vsyncpa [#allocation4], 0
    %9 = vsyncpa [#allocation5], 0
    %10 = vsyncpa [#allocation3], 0
    // Predicated region
    $region2: #{tpu_custom_call.1} parent=1 // pred_check
      _
    $region3: #{tpu_custom_call.1} parent=1 // pred_check_branch
      %12 = sbr.rel (0) target = $region5
    $region4: #{tpu_custom_call.1} parent=1 // pred_region
      %s14 = ssub.s32 16, 16
      %15 = vsyncadd [#allocation4], %s14
      %18 = dma.hbm_to_smem %s0, 16, [#allocation2], [#allocation4]
    $region5: #{tpu_custom_call.1} parent=1 // pred_fallthru
      _
    // Predicated region
    $region6: #{tpu_custom_call.1} parent=1 // pred_check
      _
    $region7: #{tpu_custom_call.1} parent=1 // pred_check_branch
      %20 = sbr.rel (0) target = $region9
    $region8: #{tpu_custom_call.1} parent=1 // pred_region
      %s22 = ssub.s32 16, 16
      %23 = vsyncadd [#allocation5], %s22
      %s25 = sshll.u32 %s1, 4
      %s26 = int_to_ptr.vmem [resolvable:$true] %s25
      %28 = dma.vmem_to_smem %s26, 16, [#allocation6], [#allocation5]
    $region9: #{tpu_custom_call.1} parent=1 // pred_fallthru
      _
    // Predicated region
    $region10: #{tpu_custom_call.1} parent=1 // pred_check
      _
    $region11: #{tpu_custom_call.1} parent=1 // pred_check_branch
      %30 = sbr.rel (0) target = $region13
    $region12: #{tpu_custom_call.1} parent=1 // pred_region
      %s32 = ssub.s32 1024, 1024
      %33 = vsyncadd [#allocation3], %s32
      %s34 = sshll.u32 [#allocation7], 4
      %s35 = int_to_ptr.vmem [resolvable:$true] %s34
      %40 = dma.hbm_to_vmem [thread:$0]  %s2, 1024, %s35, [#allocation3], 128, 128, 8
    $region13: #{tpu_custom_call.1} parent=1 // pred_fallthru
      _
    // Predicated region
    $region14: #{tpu_custom_call.1} parent=1 // pred_check
      _
    $region15: #{tpu_custom_call.1} parent=1 // pred_check_branch
      %42 = sbr.rel (0) target = $region17
    $region16: #{tpu_custom_call.1} parent=1 // pred_region
      %43 = dma.done [#allocation4], 16
    $region17: #{tpu_custom_call.1} parent=1 // pred_fallthru
      _
    // Predicated region
    $region18: #{tpu_custom_call.1} parent=1 // pred_check
      _
    $region19: #{tpu_custom_call.1} parent=1 // pred_check_branch
      %45 = sbr.rel (0) target = $region21
    $region20: #{tpu_custom_call.1} parent=1 // pred_region
      %46 = dma.done [#allocation5], 16
    $region21: #{tpu_custom_call.1} parent=1 // pred_fallthru
      _
    // Predicated region
    $region22: #{tpu_custom_call.1} parent=1 // pred_check
      _
    $region23: #{tpu_custom_call.1} parent=1 // pred_check_branch
      %48 = sbr.rel (0) target = $region25
    $region24: #{tpu_custom_call.1} parent=1 // pred_region
      %49 = dma.done [#allocation3], 1024
    $region25: #{tpu_custom_call.1} parent=1 // pred_fallthru
      _
    %50 = sfence
    %v51 = vld [vmem:[#allocation7] sm:$0xff]
    %v52 = vld [vmem:[#allocation7 + $0x8] sm:$0xff]
    %v53 = vld [vmem:[#allocation7 + $0x10] sm:$0xff]
    %v54 = vld [vmem:[#allocation7 + $0x18] sm:$0xff]
    %v55 = vld [vmem:[#allocation7 + $0x20] sm:$0xff]
    %v56 = vld [vmem:[#allocation7 + $0x28] sm:$0xff]
    %v57 = vld [vmem:[#allocation7 + $0x30] sm:$0xff]
    %v58 = vld [vmem:[#allocation7 + $0x38] sm:$0xff]
    %s59 = sld [smem:[#allocation2]]
    %s60 = sld [smem:[#allocation6]]
    %v61 = vstv %s60
    %v62 = vmin.f32 %v61, 0.9
    %v63 = vmax.f32 %v62, -1.0
    %vm64 = vcmask 556032
    %65 = vst.msk [vmem:[%s3] sm:$0xff] %vm64, %v63
    %66 = vst.msk [vmem:[%s3 + $0x8] sm:$0xff] %vm64, %v63
    %67 = vst.msk [vmem:[%s3 + $0x10] sm:$0xff] %vm64, %v63
    %68 = vst.msk [vmem:[%s3 + $0x18] sm:$0xff] %vm64, %v63
    %69 = vst.msk [vmem:[%s3 + $0x20] sm:$0xff] %vm64, %v63
    %70 = vst.msk [vmem:[%s3 + $0x28] sm:$0xff] %vm64, %v63
    %71 = vst.msk [vmem:[%s3 + $0x30] sm:$0xff] %vm64, %v63
    %72 = vst.msk [vmem:[%s3 + $0x38] sm:$0xff] %vm64, %v63
    %vm73 = vcmask 551936
    %74 = vst.msk [vmem:[%s3 + $0x40] sm:$0xf] %vm73, %v63
    %v75 = vstv %s59
    %v76 = vmul.f32 %v51, %v75
    %v77 = vmul.f32 %v52, %v75
    %v78 = vmul.f32 %v53, %v75
    %v79 = vmul.f32 %v54, %v75
    %v80 = vmul.f32 %v55, %v75
    %v81 = vmul.f32 %v56, %v75
    %v82 = vmul.f32 %v57, %v75
    %v83 = vmul.f32 %v58, %v75
    %v84 = vadd.f32 %v76, %v61
    %v85 = vadd.f32 %v77, %v61
    %v86 = vadd.f32 %v78, %v61
    %v87 = vadd.f32 %v79, %v61
    %v88 = vadd.f32 %v80, %v61
    %v89 = vadd.f32 %v81, %v61
    %v90 = vadd.f32 %v82, %v61
    %v91 = vadd.f32 %v83, %v61
    %v92 = vmin.f32 %v84, 0.9
    %v93 = vmin.f32 %v85, 0.9
    %v94 = vmin.f32 %v86, 0.9
    %v95 = vmin.f32 %v87, 0.9
    %v96 = vmin.f32 %v88, 0.9
    %v97 = vmin.f32 %v89, 0.9
    %v98 = vmin.f32 %v90, 0.9
    %v99 = vmin.f32 %v91, 0.9
    %v100 = vmax.f32 %v92, -1.0
    %v101 = vmax.f32 %v93, -1.0
    %v102 = vmax.f32 %v94, -1.0
    %v103 = vmax.f32 %v95, -1.0
    %v104 = vmax.f32 %v96, -1.0
    %v105 = vmax.f32 %v97, -1.0
    %v106 = vmax.f32 %v98, -1.0
    %v107 = vmax.f32 %v99, -1.0
    %116 = vrot.lane.b32.xlu0 %v100, 2
    %v117 = vpop.permute.xlu0 %116
    %118 = vrot.lane.b32.xlu0 %v101, 2
    %v119 = vpop.permute.xlu0 %118
    %120 = vrot.lane.b32.xlu0 %v102, 2
    %v121 = vpop.permute.xlu0 %120
    %122 = vrot.lane.b32.xlu0 %v103, 2
    %v123 = vpop.permute.xlu0 %122
    %124 = vrot.lane.b32.xlu0 %v104, 2
    %v125 = vpop.permute.xlu0 %124
    %126 = vrot.lane.b32.xlu0 %v105, 2
    %v127 = vpop.permute.xlu0 %126
    %128 = vrot.lane.b32.xlu0 %v106, 2
    %v129 = vpop.permute.xlu0 %128
    %130 = vrot.lane.b32.xlu0 %v107, 2
    %v131 = vpop.permute.xlu0 %130
    %vm140 = vcmask 539664
    %141 = vst.msk [vmem:[%s3 + $0x2] sm:$0xff] %vm140, %v117
    %142 = vst.msk [vmem:[%s3 + $0xa] sm:$0xff] %vm140, %v119
    %143 = vst.msk [vmem:[%s3 + $0x12] sm:$0xff] %vm140, %v121
    %144 = vst.msk [vmem:[%s3 + $0x1a] sm:$0xff] %vm140, %v123
    %145 = vst.msk [vmem:[%s3 + $0x22] sm:$0xff] %vm140, %v125
    %146 = vst.msk [vmem:[%s3 + $0x2a] sm:$0xff] %vm140, %v127
    %147 = vst.msk [vmem:[%s3 + $0x32] sm:$0xff] %vm140, %v129
    %148 = vst.msk [vmem:[%s3 + $0x3a] sm:$0xff] %vm140, %v131
    %s149 = sld [smem:[#allocation2 + $0x1]]
    %s150 = sld [smem:[#allocation6 + $0x1]]
    %v151 = vstv %s150
    %v152 = vmin.f32 %v151, 0.9
    %v153 = vmax.f32 %v152, -1.0
    %s154 = scalar_lea.vmem %s3, 72
    %155 = vst.msk [vmem:[%s154] sm:$0xff] %vm64, %v153
    %156 = vst.msk [vmem:[%s154 + $0x8] sm:$0xff] %vm64, %v153
    %157 = vst.msk [vmem:[%s154 + $0x10] sm:$0xff] %vm64, %v153
    %158 = vst.msk [vmem:[%s154 + $0x18] sm:$0xff] %vm64, %v153
    %159 = vst.msk [vmem:[%s154 + $0x20] sm:$0xff] %vm64, %v153
    %160 = vst.msk [vmem:[%s154 + $0x28] sm:$0xff] %vm64, %v153
    %161 = vst.msk [vmem:[%s154 + $0x30] sm:$0xff] %vm64, %v153
    %162 = vst.msk [vmem:[%s154 + $0x38] sm:$0xff] %vm64, %v153
    %163 = vst.msk [vmem:[%s154 + $0x40] sm:$0xf] %vm73, %v153
    %v164 = vstv %s149
    %v165 = vmul.f32 %v51, %v164
    %v166 = vmul.f32 %v52, %v164
    %v167 = vmul.f32 %v53, %v164
    %v168 = vmul.f32 %v54, %v164
    %v169 = vmul.f32 %v55, %v164
    %v170 = vmul.f32 %v56, %v164
    %v171 = vmul.f32 %v57, %v164
    %v172 = vmul.f32 %v58, %v164
    %v173 = vadd.f32 %v165, %v151
    %v174 = vadd.f32 %v166, %v151
    %v175 = vadd.f32 %v167, %v151
    %v176 = vadd.f32 %v168, %v151
    %v177 = vadd.f32 %v169, %v151
    %v178 = vadd.f32 %v170, %v151
    %v179 = vadd.f32 %v171, %v151
    %v180 = vadd.f32 %v172, %v151
    %v181 = vmin.f32 %v173, 0.9
    %v182 = vmin.f32 %v174, 0.9
    %v183 = vmin.f32 %v175, 0.9
    %v184 = vmin.f32 %v176, 0.9
    %v185 = vmin.f32 %v177, 0.9
    %v186 = vmin.f32 %v178, 0.9
    %v187 = vmin.f32 %v179, 0.9
    %v188 = vmin.f32 %v180, 0.9
    %v189 = vmax.f32 %v181, -1.0
    %v190 = vmax.f32 %v182, -1.0
    %v191 = vmax.f32 %v183, -1.0
    %v192 = vmax.f32 %v184, -1.0
    %v193 = vmax.f32 %v185, -1.0
    %v194 = vmax.f32 %v186, -1.0
    %v195 = vmax.f32 %v187, -1.0
    %v196 = vmax.f32 %v188, -1.0
    %205 = vrot.lane.b32.xlu0 %v189, 2
    %v206 = vpop.permute.xlu0 %205
    %207 = vrot.lane.b32.xlu0 %v190, 2
    %v208 = vpop.permute.xlu0 %207
    %209 = vrot.lane.b32.xlu0 %v191, 2
    %v210 = vpop.permute.xlu0 %209
    %211 = vrot.lane.b32.xlu0 %v192, 2
    %v212 = vpop.permute.xlu0 %211
    %213 = vrot.lane.b32.xlu0 %v193, 2
    %v214 = vpop.permute.xlu0 %213
    %215 = vrot.lane.b32.xlu0 %v194, 2
    %v216 = vpop.permute.xlu0 %215
    %217 = vrot.lane.b32.xlu0 %v195, 2
    %v218 = vpop.permute.xlu0 %217
    %219 = vrot.lane.b32.xlu0 %v196, 2
    %v220 = vpop.permute.xlu0 %219
    %229 = vst.msk [vmem:[%s154 + $0x2] sm:$0xff] %vm140, %v206
    %230 = vst.msk [vmem:[%s154 + $0xa] sm:$0xff] %vm140, %v208
    %231 = vst.msk [vmem:[%s154 + $0x12] sm:$0xff] %vm140, %v210
    %232 = vst.msk [vmem:[%s154 + $0x1a] sm:$0xff] %vm140, %v212
    %233 = vst.msk [vmem:[%s154 + $0x22] sm:$0xff] %vm140, %v214
    %234 = vst.msk [vmem:[%s154 + $0x2a] sm:$0xff] %vm140, %v216
    %235 = vst.msk [vmem:[%s154 + $0x32] sm:$0xff] %vm140, %v218
    %236 = vst.msk [vmem:[%s154 + $0x3a] sm:$0xff] %vm140, %v220
    // Predicated region
    $region26: #{tpu_custom_call.1} parent=1 // pred_check
      _
    $region27: #{tpu_custom_call.1} parent=1 // pred_check_branch
      %238 = sbr.rel (0) target = $region29
    $region28: #{tpu_custom_call.1} parent=1 // pred_region
      _
    $region29: #{tpu_custom_call.1} parent=1 // pred_fallthru
      _
    // Predicated region
    $region30: #{tpu_custom_call.1} parent=1 // pred_check
      _
    $region31: #{tpu_custom_call.1} parent=1 // pred_check_branch
      %240 = sbr.rel (0) target = $region33
    $region32: #{tpu_custom_call.1} parent=1 // pred_region
      _
    $region33: #{tpu_custom_call.1} parent=1 // pred_fallthru
      _
    %241 = vsyncpa [#allocation3], 1
    %242 = vsyncpa [#allocation4], 1
    %243 = vsyncpa [#allocation5], 1

</llo_original>
